<compile_context>
chip_gen: v7x
topology: tpu7x:2x2x1
jax: 0.10.0
libtpu: 0.0.40
codegen_flags: <defaults>
</compile_context>

<pallas_src>
import functools
import math

import jax
import jax.numpy as jnp
from jax.experimental import pallas as pl
from jax.experimental.pallas import tpu as pltpu

_LN2 = math.log(2.0)


def _logcosh_loss_kernel(y_ref, yp_ref, out_ref, acc_ref, *,
                         n_rows, tile_rows, tiles_per_slice, lane_dense):
    s = pl.program_id(0)
    i = pl.program_id(1)

    @pl.when(i == 0)
    def _():
        acc_ref[...] = jnp.zeros_like(acc_ref)

    # Upcast in VMEM so bf16 inputs work without extra HBM traffic.
    y = y_ref[...].astype(jnp.float32)
    yp = yp_ref[...].astype(jnp.float32)

    if lane_dense:
        # (TN, D) -> (TN//128, 128, D): free split of the leading axis; the
        # axis=-1 reductions then produce a (TN//128, 128) lane-dense layout.
        g = tile_rows // 128
        d = y.shape[-1]
        y = y.reshape(g, 128, d)
        yp = yp.reshape(g, 128, d)
        dot = jnp.sum(y * yp, axis=-1)                   # (g, 128)
        n1 = jnp.sum(y * y, axis=-1)                     # (g, 128)
        n2 = jnp.sum(yp * yp, axis=-1)                   # (g, 128)
        row_in_tile = (
            jax.lax.broadcasted_iota(jnp.int32, (g, 128), 0) * 128
            + jax.lax.broadcasted_iota(jnp.int32, (g, 128), 1))
    else:
        # Fallback (tile not a multiple of 128 rows): lane-sparse column path.
        dot = jnp.sum(y * yp, axis=1, keepdims=True)     # (TN, 1)
        n1 = jnp.sum(y * y, axis=1, keepdims=True)
        n2 = jnp.sum(yp * yp, axis=1, keepdims=True)
        row_in_tile = jax.lax.broadcasted_iota(jnp.int32, (tile_rows, 1), 0)

    # cos = dot / max(||y||*||y'||, 1e-8)  ==  dot * min(rsqrt(n1)*rsqrt(n2), 1e8)
    # Two EUP rsqrts; no dynamic-range squaring from sqrt(n1*n2).
    inv = jnp.minimum(jax.lax.rsqrt(n1) * jax.lax.rsqrt(n2), jnp.float32(1e8))
    x = dot * inv + jnp.float32(1e-12)

    # log(cosh(x)) = |x| + log(1 + exp(-2|x|)) - log 2   (no overflow, EUP ops)
    ax = jnp.abs(x)
    lc = ax + jnp.log(1.0 + jnp.exp(-2.0 * ax)) - jnp.float32(_LN2)

    tile_idx = s * tiles_per_slice + i                    # unclamped linear tile index
    in_range = (tile_idx + 1) * tile_rows <= n_rows       # scalar: tile fully valid?

    @pl.when(in_range)
    def _():
        acc_ref[...] += jnp.sum(lc, keepdims=True)        # (1, 1) running sum

    @pl.when(jnp.logical_not(in_range))
    def _():
        # Partial last tile, or the duplicated clamped tile of an uneven slice
        # split: zero out rows past the true batch BEFORE accumulating.
        row = tile_idx * tile_rows + row_in_tile
        acc_ref[...] += jnp.sum(jnp.where(row < n_rows, lc, 0.0), keepdims=True)

    @pl.when(i == pl.num_programs(1) - 1)
    def _():
        out_ref[...] = acc_ref[...]                       # per-slice partial sum


def _num_tensorcores() -> int:
    """Best-effort TensorCores-per-chip query (v7x: 2; v5e/v6e: 1)."""
    try:
        info = pltpu.get_tpu_info()
    except Exception:
        return 1
    for attr in ("num_cores", "num_tensorcores", "tensor_core_count",
                 "cores_per_chip", "num_cores_per_chip"):
        v = getattr(info, attr, None)
        if isinstance(v, int) and v >= 1:
            return v
    return 1


def log_cosh_loss(y_t: jax.Array, y_prime_t: jax.Array, *,
                  block_rows=None, num_slices=None) -> jax.Array:
    """Pallas implementation of LogCoshLoss.forward for (N, D) inputs."""
    assert y_t.shape == y_prime_t.shape and y_t.ndim == 2
    N, D = y_t.shape
    itemsize = max(jnp.dtype(y_t.dtype).itemsize, jnp.dtype(y_prime_t.dtype).itemsize)

    if block_rows is None:
        # ~4 MiB of input per block per step (~16 MiB double-buffered over the
        # two inputs) amortizes per-step overhead; cap at 4096 rows.
        budget = 4 << 20
        tn = budget // (itemsize * D)
        if tn >= 128:
            tn = min(4096, (tn // 128) * 128)   # multiple of 128 -> lane-dense epilogue
        else:
            tn = max(8, (tn // 8) * 8)
    else:
        assert block_rows % 8 == 0, "block_rows must be a multiple of 8"
        tn = block_rows
    if N <= tn:
        tn = N  # full-array block (allowed even if N % 8 != 0)

    lane_dense = tn > 0 and (tn % 128 == 0)

    t_total = pl.cdiv(N, tn)
    if num_slices is None:
        num_slices = min(2, _num_tensorcores())   # split only where there are 2 TCs
    ns = max(1, min(num_slices, t_total))
    tiles_per_slice = pl.cdiv(t_total, ns)

    def in_map(s, i):
        # Clamp so the DMA never targets an out-of-range block; the duplicated
        # tile of an uneven split contributes exactly zero via the row mask.
        t = jnp.minimum(s * tiles_per_slice + i, t_total - 1)
        return (t, 0)

    kernel = functools.partial(
        _logcosh_loss_kernel,
        n_rows=N, tile_rows=tn, tiles_per_slice=tiles_per_slice,
        lane_dense=lane_dense)

    # Scoped-VMEM budget: 2 inputs x 2 pipeline buffers of raw tiles plus room
    # for the in-kernel f32 upcasts/temps; clamped so the request is safe on
    # every chip (v5e scoped default is 16 MiB; v7x physical VMEM is 64 MiB).
    in_block_bytes = tn * D * itemsize
    vmem_need = 4 * in_block_bytes + 4 * tn * D * 4 + (2 << 20)
    vmem_limit = int(min(max(vmem_need, 16 << 20), 48 << 20))

    partials = pl.pallas_call(
        kernel,
        out_shape=jax.ShapeDtypeStruct((ns, 1), jnp.float32),
        grid_spec=pltpu.PrefetchScalarGridSpec(
            num_scalar_prefetch=0,
            grid=(ns, tiles_per_slice),
            in_specs=[
                pl.BlockSpec((tn, D), in_map),
                pl.BlockSpec((tn, D), in_map),
            ],
            out_specs=pl.BlockSpec((1, 1), lambda s, i: (s, 0)),
            scratch_shapes=[pltpu.VMEM((1, 1), jnp.float32)],
        ),
        compiler_params=pltpu.CompilerParams(
            # TODO(synk): on v7x, verify via xprof that "parallel" shards the
            # slice axis across both TensorCores; switch to pltpu.CORE_PARALLEL
            # if it does not.
            dimension_semantics=("parallel", "arbitrary"),
            vmem_limit_bytes=vmem_limit,
        ),
    )(y_t, y_prime_t)

    return jnp.sum(partials) / N


def _reference(y_t, y_prime_t):
    dot = jnp.sum(y_t * y_prime_t, axis=1)
    denom = jnp.maximum(
        jnp.linalg.norm(y_t, axis=1) * jnp.linalg.norm(y_prime_t, axis=1), 1e-8
    )
    return jnp.mean(jnp.log(jnp.cosh(dot / denom + 1e-12)))


if __name__ == "__main__":
    key = jax.random.PRNGKey(0)
    k1, k2, k3, k4 = jax.random.split(key, 4)

    # Small shapes consistent with the module: batch=8 feature vectors of dim 128.
    N, D = 8, 128
    y_t = jax.random.normal(k1, (N, D), dtype=jnp.float32)
    y_prime_t = jax.random.normal(k2, (N, D), dtype=jnp.float32)

    loss = log_cosh_loss(y_t, y_prime_t)
    jax.block_until_ready(loss)
    ref = _reference(y_t, y_prime_t)
    assert jnp.allclose(loss, ref, atol=1e-5, rtol=1e-5), (loss, ref)

    # Exercise the tiled, lane-dense, masked, 2-slice path (uneven split, partial tile).
    N2, D2 = 300, 128
    a = jax.random.normal(k3, (N2, D2), dtype=jnp.float32)
    b = jax.random.normal(k4, (N2, D2), dtype=jnp.float32)
    loss2 = log_cosh_loss(a, b, block_rows=128, num_slices=2)
    jax.block_until_ready(loss2)
    ref2 = _reference(a, b)
    assert jnp.allclose(loss2, ref2, atol=1e-5, rtol=1e-5), (loss2, ref2)

    print("KERNEL_OK")
</pallas_src>

<mosaic_0001>
module attributes {stable_mosaic.version = 11 : i64} {
  func.func @_logcosh_loss_kernel(%arg0: i32, %arg1: i32, %arg2: memref<8x128xf32, #tpu.memory_space<vmem>>, %arg3: memref<8x128xf32, #tpu.memory_space<vmem>>, %arg4: memref<1x1xf32, #tpu.memory_space<vmem>>, %arg5: memref<1x1xf32, #tpu.memory_space<vmem>>) attributes {dimension_semantics = [#tpu.dimension_semantics<parallel>, #tpu.dimension_semantics<arbitrary>], iteration_bounds = array<i64: 1, 1>, scalar_prefetch = 0 : i64, scratch_operands = 1 : i64, tpu.core_type = #tpu.core_type<tc>, window_params = [{transform_indices = @transform_0, window_bounds = array<i64: 8, 128>}, {transform_indices = @transform_1, window_bounds = array<i64: 8, 128>}, {transform_indices = @transform_2, window_bounds = array<i64: 1, 1>}]} {
    %c0_i32 = arith.constant 0 : i32
    %0 = arith.cmpi eq, %arg1, %c0_i32 : i32
    %1 = arith.extui %0 : i1 to i32
    %c0_i32_0 = arith.constant 0 : i32
    %2 = arith.cmpi ne, %1, %c0_i32_0 : i32
    scf.if %2 {
      %cst_17 = arith.constant 0.000000e+00 : f32
      %46 = vector.broadcast %cst_17 : f32 to vector<1x1xf32>
      %c0_18 = arith.constant 0 : index
      %c0_19 = arith.constant 0 : index
      %47 = vector.load %arg5[%c0_18, %c0_19] : memref<1x1xf32, #tpu.memory_space<vmem>>, vector<1x1xf32>
      tpu.vector_store %arg5[%c0_18, %c0_19], %46 {strides = array<i32>} : memref<1x1xf32, #tpu.memory_space<vmem>>, vector<1x1xf32>,
    } else {
    }
    %c0 = arith.constant 0 : index
    %c0_1 = arith.constant 0 : index
    %3 = vector.load %arg2[%c0, %c0_1] : memref<8x128xf32, #tpu.memory_space<vmem>>, vector<8x128xf32>
    %c0_2 = arith.constant 0 : index
    %c0_3 = arith.constant 0 : index
    %4 = vector.load %arg3[%c0_2, %c0_3] : memref<8x128xf32, #tpu.memory_space<vmem>>, vector<8x128xf32>
    %5 = arith.mulf %3, %4 : vector<8x128xf32>
    %cst = arith.constant dense<0.000000e+00> : vector<8xf32>
    %6 = vector.multi_reduction <add>, %5, %cst [1] : vector<8x128xf32> to vector<8xf32>
    %7 = vector.shape_cast %6 : vector<8xf32> to vector<8x1xf32>
    %8 = arith.mulf %3, %3 : vector<8x128xf32>
    %cst_4 = arith.constant dense<0.000000e+00> : vector<8xf32>
    %9 = vector.multi_reduction <add>, %8, %cst_4 [1] : vector<8x128xf32> to vector<8xf32>
    %10 = vector.shape_cast %9 : vector<8xf32> to vector<8x1xf32>
    %11 = arith.mulf %4, %4 : vector<8x128xf32>
    %cst_5 = arith.constant dense<0.000000e+00> : vector<8xf32>
    %12 = vector.multi_reduction <add>, %11, %cst_5 [1] : vector<8x128xf32> to vector<8xf32>
    %13 = vector.shape_cast %12 : vector<8xf32> to vector<8x1xf32>
    %14 = tpu.iota {dimensions = array<i32: 0>} : vector<8x1xi32>
    %15 = math.rsqrt %10 : vector<8x1xf32>
    %16 = math.rsqrt %13 : vector<8x1xf32>
    %17 = arith.mulf %15, %16 : vector<8x1xf32>
    %cst_6 = arith.constant 1.000000e+08 : f32
    %18 = vector.broadcast %cst_6 : f32 to vector<8x1xf32>
    %19 = arith.minimumf %17, %18 : vector<8x1xf32>
    %20 = arith.mulf %7, %19 : vector<8x1xf32>
    %cst_7 = arith.constant 9.99999996E-13 : f32
    %21 = vector.broadcast %cst_7 : f32 to vector<8x1xf32>
    %22 = arith.addf %20, %21 : vector<8x1xf32>
    %23 = math.absf %22 : vector<8x1xf32>
    %cst_8 = arith.constant -2.000000e+00 : f32
    %24 = vector.broadcast %cst_8 : f32 to vector<8x1xf32>
    %25 = arith.mulf %24, %23 : vector<8x1xf32>
    %26 = math.exp %25 : vector<8x1xf32>
    %cst_9 = arith.constant 1.000000e+00 : f32
    %27 = vector.broadcast %cst_9 : f32 to vector<8x1xf32>
    %28 = arith.addf %27, %26 : vector<8x1xf32>
    %29 = math.log %28 : vector<8x1xf32>
    %30 = arith.addf %23, %29 : vector<8x1xf32>
    %cst_10 = arith.constant 0.693147182 : f32
    %31 = vector.broadcast %cst_10 : f32 to vector<8x1xf32>
    %32 = arith.subf %30, %31 : vector<8x1xf32>
    %c1_i32 = arith.constant 1 : i32
    %33 = arith.muli %arg0, %c1_i32 : i32
    %34 = arith.addi %33, %arg1 : i32
    %c1_i32_11 = arith.constant 1 : i32
    %35 = arith.addi %34, %c1_i32_11 : i32
    %c8_i32 = arith.constant 8 : i32
    %36 = arith.muli %35, %c8_i32 : i32
    %c8_i32_12 = arith.constant 8 : i32
    %37 = arith.cmpi sle, %36, %c8_i32_12 : i32
    %38 = arith.extui %37 : i1 to i32
    %c0_i32_13 = arith.constant 0 : i32
    %39 = arith.cmpi ne, %38, %c0_i32_13 : i32
    scf.if %39 {
      %c0_17 = arith.constant 0 : index
      %c0_18 = arith.constant 0 : index
      %46 = vector.load %arg5[%c0_17, %c0_18] : memref<1x1xf32, #tpu.memory_space<vmem>>, vector<1x1xf32>
      %47 = vector.shape_cast %32 : vector<8x1xf32> to vector<1x8x1xf32>
      %cst_19 = arith.constant dense<0.000000e+00> : vector<1xf32>
      %48 = vector.multi_reduction <add>, %47, %cst_19 [1, 2] : vector<1x8x1xf32> to vector<1xf32>
      %49 = vector.shape_cast %48 : vector<1xf32> to vector<1x1x1xf32>
      %50 = vector.extract %49[0, 0, 0] : f32 from vector<1x1x1xf32>
      %51 = vector.broadcast %50 : f32 to vector<1x1xf32>
      %52 = arith.addf %46, %51 : vector<1x1xf32>
      %c0_20 = arith.constant 0 : index
      %c0_21 = arith.constant 0 : index
      %53 = vector.load %arg5[%c0_20, %c0_21] : memref<1x1xf32, #tpu.memory_space<vmem>>, vector<1x1xf32>
      tpu.vector_store %arg5[%c0_20, %c0_21], %52 {strides = array<i32>} : memref<1x1xf32, #tpu.memory_space<vmem>>, vector<1x1xf32>,
    } else {
    }
    %true = arith.constant true
    %40 = arith.xori %37, %true : i1
    %41 = arith.extui %40 : i1 to i32
    %c0_i32_14 = arith.constant 0 : i32
    %42 = arith.cmpi ne, %41, %c0_i32_14 : i32
    scf.if %42 {
      %c8_i32_17 = arith.constant 8 : i32
      %46 = arith.muli %34, %c8_i32_17 : i32
      %47 = vector.broadcast %46 : i32 to vector<8x1xi32>
      %48 = arith.addi %47, %14 : vector<8x1xi32>
      %c0_18 = arith.constant 0 : index
      %c0_19 = arith.constant 0 : index
      %49 = vector.load %arg5[%c0_18, %c0_19] : memref<1x1xf32, #tpu.memory_space<vmem>>, vector<1x1xf32>
      %c8_i32_20 = arith.constant 8 : i32
      %50 = vector.broadcast %c8_i32_20 : i32 to vector<8x1xi32>
      %51 = arith.cmpi slt, %48, %50 : vector<8x1xi32>
      %cst_21 = arith.constant 0.000000e+00 : f32
      %52 = vector.broadcast %cst_21 : f32 to vector<8x1xf32>
      %53 = arith.select %51, %32, %52 : vector<8x1xi1>, vector<8x1xf32>
      %54 = vector.shape_cast %53 : vector<8x1xf32> to vector<1x8x1xf32>
      %cst_22 = arith.constant dense<0.000000e+00> : vector<1xf32>
      %55 = vector.multi_reduction <add>, %54, %cst_22 [1, 2] : vector<1x8x1xf32> to vector<1xf32>
      %56 = vector.shape_cast %55 : vector<1xf32> to vector<1x1x1xf32>
      %57 = vector.extract %56[0, 0, 0] : f32 from vector<1x1x1xf32>
      %58 = vector.broadcast %57 : f32 to vector<1x1xf32>
      %59 = arith.addf %49, %58 : vector<1x1xf32>
      %c0_23 = arith.constant 0 : index
      %c0_24 = arith.constant 0 : index
      %60 = vector.load %arg5[%c0_23, %c0_24] : memref<1x1xf32, #tpu.memory_space<vmem>>, vector<1x1xf32>
      tpu.vector_store %arg5[%c0_23, %c0_24], %59 {strides = array<i32>} : memref<1x1xf32, #tpu.memory_space<vmem>>, vector<1x1xf32>,
    } else {
    }
    %c0_i32_15 = arith.constant 0 : i32
    %43 = arith.cmpi eq, %arg1, %c0_i32_15 : i32
    %44 = arith.extui %43 : i1 to i32
    %c0_i32_16 = arith.constant 0 : i32
    %45 = arith.cmpi ne, %44, %c0_i32_16 : i32
    scf.if %45 {
      %c0_17 = arith.constant 0 : index
      %c0_18 = arith.constant 0 : index
      %46 = vector.load %arg5[%c0_17, %c0_18] : memref<1x1xf32, #tpu.memory_space<vmem>>, vector<1x1xf32>
      %c0_19 = arith.constant 0 : index
      %c0_20 = arith.constant 0 : index
      %47 = vector.load %arg4[%c0_19, %c0_20] : memref<1x1xf32, #tpu.memory_space<vmem>>, vector<1x1xf32>
      tpu.vector_store %arg4[%c0_19, %c0_20], %46 {strides = array<i32>} : memref<1x1xf32, #tpu.memory_space<vmem>>, vector<1x1xf32>,
    } else {
    }
    return
  }
  func.func @transform_0(%arg0: i32, %arg1: i32) -> (i32, i32) {
    %c1_i32 = arith.constant 1 : i32
    %0 = arith.muli %arg0, %c1_i32 : i32
    %1 = arith.addi %0, %arg1 : i32
    %c0_i32 = arith.constant 0 : i32
    %2 = arith.minsi %1, %c0_i32 : i32
    %c0_i32_0 = arith.constant 0 : i32
    %c0_i32_1 = arith.constant 0 : i32
    return %2, %c0_i32_0 : i32, i32
  }
  func.func @transform_1(%arg0: i32, %arg1: i32) -> (i32, i32) {
    %c1_i32 = arith.constant 1 : i32
    %0 = arith.muli %arg0, %c1_i32 : i32
    %1 = arith.addi %0, %arg1 : i32
    %c0_i32 = arith.constant 0 : i32
    %2 = arith.minsi %1, %c0_i32 : i32
    %c0_i32_0 = arith.constant 0 : i32
    %c0_i32_1 = arith.constant 0 : i32
    return %2, %c0_i32_0 : i32, i32
  }
  func.func @transform_2(%arg0: i32, %arg1: i32) -> (i32, i32) {
    %c0_i32 = arith.constant 0 : i32
    %c0_i32_0 = arith.constant 0 : i32
    return %arg0, %c0_i32 : i32, i32
  }
}

</mosaic_0001>

<llo_original>
// kernel: tpu_custom_call.1
$region0: #{tpu_custom_call.1}
  #allocation0 [shape = 'u32[]', space=smem, size = 0x4, offset = 0x4, fixed_abs, tag = 'smem constant byte address 0x4 - core index']
  #allocation1 [shape = 'u32[144,128]{1,0:T(1,128)}', space=vmem, size = 0x12000, scoped, tag = 'internal scratch']
  #allocation2 [shape = 'f32[1,1]{1,0:T(1,128)}', space=vmem, size = 0x200, scoped, tag = 'scratch operand']
  %s0 = inlined_call_operand.hbm [shape: f32[8,128], index: 0, kind: input, shape index: {}]
  %s1 = inlined_call_operand.hbm [shape: f32[8,128], index: 1, kind: input, shape index: {}]
  %s2 = inlined_call_operand.hbm [shape: f32[1,1], index: 2, kind: output, shape index: {}]
  %s3 = sld [smem:[#allocation0]]
  $region42: #{tpu_custom_call.1} parent=0
    _
  %s5 = ssub.s32 1, %s3
  %s6 = scalar_select 0, %s5, %s3
  $region1: #{tpu_custom_call.1} parent=0
    #allocation3 [shape = 'u8[4096]{0}', space=vmem, size = 0x1000, scoped, tag = 'input window, operand 0, single buffered']
    #allocation4 [shape = 's32[1]{0}', space=sflag, size = 0x4, scoped, tag = 'scoped memory for tpu_custom_call.1']
    #allocation5 [shape = 's32[1]{0}', space=sflag, size = 0x4, scoped, tag = 'scoped memory for tpu_custom_call.1']
    #allocation6 [shape = 'u8[4096]{0}', space=vmem, size = 0x1000, scoped, tag = 'input window, operand 1, single buffered']
    #allocation7 [shape = 's32[1]{0}', space=sflag, size = 0x4, scoped, tag = 'scoped memory for tpu_custom_call.1']
    #allocation8 [shape = 'u8[512]{0}', space=vmem, size = 0x400, scoped, tag = 'output window, operand 0, single buffered']
    %7 = vsyncpa [#allocation4], 0
    %8 = vsyncpa [#allocation7], 0
    %9 = vsyncpa [#allocation5], 0
    // Predicated region
    $region2: #{tpu_custom_call.1} parent=1 // pred_check
      _
    $region3: #{tpu_custom_call.1} parent=1 // pred_check_branch
      %11 = sbr.rel (0) target = $region5
    $region4: #{tpu_custom_call.1} parent=1 // pred_region
      %s12 = sadd.s32 0, 0
      %p13 = scmp.lt.s32.totalorder %s12, 0
      %s14 = scalar_select %p13, %s12, 0
      %s16 = ssub.s32 128, 128
      %17 = vsyncadd [#allocation4], %s16
      %s18 = smul.addr %s14, 128
      %s19 = scalar_lea.hbm %s0, %s18
      %s21 = sshll.u32 [#allocation3], 4
      %s22 = int_to_ptr.vmem [resolvable:$true] %s21
      %24 = dma.hbm_to_vmem [thread:$0]  %s19, 128, %s22, [#allocation4]
    $region5: #{tpu_custom_call.1} parent=1 // pred_fallthru
      _
    // Predicated region
    $region6: #{tpu_custom_call.1} parent=1 // pred_check
      _
    $region7: #{tpu_custom_call.1} parent=1 // pred_check_branch
      %26 = sbr.rel (0) target = $region9
    $region8: #{tpu_custom_call.1} parent=1 // pred_region
      %s27 = sadd.s32 0, 0
      %p28 = scmp.lt.s32.totalorder %s27, 0
      %s29 = scalar_select %p28, %s27, 0
      %s31 = ssub.s32 128, 128
      %32 = vsyncadd [#allocation7], %s31
      %s33 = smul.addr %s29, 128
      %s34 = scalar_lea.hbm %s1, %s33
      %s36 = sshll.u32 [#allocation6], 4
      %s37 = int_to_ptr.vmem [resolvable:$true] %s36
      %39 = dma.hbm_to_vmem [thread:$0]  %s34, 128, %s37, [#allocation7]
    $region9: #{tpu_custom_call.1} parent=1 // pred_fallthru
      _
    // Predicated region
    $region10: #{tpu_custom_call.1} parent=1 // pred_check
      _
    $region11: #{tpu_custom_call.1} parent=1 // pred_check_branch
      %41 = sbr.rel (0) target = $region13
    $region12: #{tpu_custom_call.1} parent=1 // pred_region
      %42 = dma.done [#allocation4], 128
    $region13: #{tpu_custom_call.1} parent=1 // pred_fallthru
      _
    // Predicated region
    $region14: #{tpu_custom_call.1} parent=1 // pred_check
      _
    $region15: #{tpu_custom_call.1} parent=1 // pred_check_branch
      %44 = sbr.rel (0) target = $region17
    $region16: #{tpu_custom_call.1} parent=1 // pred_region
      %45 = dma.done [#allocation7], 128
    $region17: #{tpu_custom_call.1} parent=1 // pred_fallthru
      _
    %s46 = sadd.s32 0, 0
    %p47 = scmp.lt.s32.totalorder %s46, 0
    %s48 = scalar_select %p47, %s46, 0
    %s49 = sadd.s32 0, 0
    %p50 = scmp.lt.s32.totalorder %s49, 0
    %s51 = scalar_select %p50, %s49, 0
    %p52 = scmp.eq.s32.totalorder 0, 0
    // Predicated region
    $region18: #{tpu_custom_call.1} parent=1 // pred_check
      %p53 = pneg %p52
    $region19: #{tpu_custom_call.1} parent=1 // pred_check_branch
      %55 = sbr.rel (%p53) target = $region21
    $region20: #{tpu_custom_call.1} parent=1 // pred_region
      %vm56 = vcmask 0
      %57 = vst.msk [vmem:[#allocation2] sm:$0x1] %vm56, 0.0
    $region21: #{tpu_custom_call.1} parent=1 // pred_fallthru
      _
    %v58 = vld [vmem:[#allocation3] sm:$0xff]
    %v59 = vld [vmem:[#allocation6] sm:$0xff]
    %v60 = vmul.f32 %v58, %v59
    %61 = vadd.xlane.f32.xlu0 %v60
    %v62 = vpop.xlane.xlu0 %61
    %v63 = vmul.f32 %v58, %v58
    %64 = vadd.xlane.f32.xlu0 %v63
    %v65 = vpop.xlane.xlu0 %64
    %v66 = vmul.f32 %v59, %v59
    %67 = vadd.xlane.f32.xlu0 %v66
    %v68 = vpop.xlane.xlu0 %67
    %v69 = vlaneseq
    %v70 = vshrl.u32 %v69, 7
    %v71 = vrsqrt.pop %v65
    %v72 = vrsqrt.pop %v68
    %v73 = vmul.f32 %v71, %v72
    %v74 = vmin.f32 %v73, 1e+08
    %v75 = vmul.f32 %v62, %v74
    %v76 = vadd.f32 %v75, 1e-12
    %v77 = vand.u32 2147483647, %v76
    %v78 = vmul.f32 %v77, -2.0
    %v79 = vmul.f32 %v78, 1.442695
    %v80 = vpow.pop %v79
    %v81 = vadd.f32 %v80, 1.0
    %v82 = vlog2.pop %v81
    %v83 = vmul.f32 %v82, 0.6931472
    %v84 = vadd.f32 %v77, %v83
    %v85 = vsub.f32 %v84, 0.6931472
    %s86 = sadd.s32 0, 0
    %s87 = sadd.s32 %s86, 1
    %s88 = smul.u32 %s87, 8
    %p89 = scmp.le.s32.totalorder %s88, 8
    // Predicated region
    $region22: #{tpu_custom_call.1} parent=1 // pred_check
      %p90 = pneg %p89
    $region23: #{tpu_custom_call.1} parent=1 // pred_check_branch
      %92 = sbr.rel (%p90) target = $region25
    $region24: #{tpu_custom_call.1} parent=1 // pred_region
      %v93 = vld [vmem:[#allocation2] sm:$0x1]
      %vm94 = vcmask 7168
      %v95 = vsel %vm94, %v85, 0.0
      %96 = vadd.xlane.f32.xlu0 %v95
      %v97 = vpop.xlane.xlu0 %96
      %v98 = vrot.slane %v97, 4
      %v99 = vadd.f32 %v97, %v98
      %v100 = vrot.slane %v99, 2
      %v101 = vadd.f32 %v99, %v100
      %v102 = vrot.slane %v101, 1
      %v103 = vadd.f32 %v101, %v102
      %s104 = vtos %v103
      %v105 = vstv %s104
      %v106 = vadd.f32 %v93, %v105
      %vm107 = vcmask 0
      %108 = vst.msk [vmem:[#allocation2] sm:$0x1] %vm107, %v106
    $region25: #{tpu_custom_call.1} parent=1 // pred_fallthru
      _
    %p109 = scmp.gt.s32.totalorder %s88, 8
    // Predicated region
    $region26: #{tpu_custom_call.1} parent=1 // pred_check
      %p110 = pneg %p109
    $region27: #{tpu_custom_call.1} parent=1 // pred_check_branch
      %112 = sbr.rel (%p110) target = $region29
    $region28: #{tpu_custom_call.1} parent=1 // pred_region
      %s113 = smul.u32 %s86, 8
      %v114 = vstv %s113
      %v115 = vadd.s32 %v114, %v70
      %v116 = vld [vmem:[#allocation2] sm:$0x1]
      %vm117 = vcmp.lt.s32.totalorder %v115, 8
      %v118 = vsel %vm117, %v85, 0.0
      %vm119 = vcmask 7168
      %v120 = vsel %vm119, %v118, 0.0
      %121 = vadd.xlane.f32.xlu0 %v120
      %v122 = vpop.xlane.xlu0 %121
      %v123 = vrot.slane %v122, 4
      %v124 = vadd.f32 %v122, %v123
      %v125 = vrot.slane %v124, 2
      %v126 = vadd.f32 %v124, %v125
      %v127 = vrot.slane %v126, 1
      %v128 = vadd.f32 %v126, %v127
      %s129 = vtos %v128
      %v130 = vstv %s129
      %v131 = vadd.f32 %v116, %v130
      %vm132 = vcmask 0
      %133 = vst.msk [vmem:[#allocation2] sm:$0x1] %vm132, %v131
    $region29: #{tpu_custom_call.1} parent=1 // pred_fallthru
      _
    // Predicated region
    $region30: #{tpu_custom_call.1} parent=1 // pred_check
      %p134 = pneg %p52
    $region31: #{tpu_custom_call.1} parent=1 // pred_check_branch
      %136 = sbr.rel (%p134) target = $region33
    $region32: #{tpu_custom_call.1} parent=1 // pred_region
      %v137 = vld [vmem:[#allocation2] sm:$0x1]
      %vm138 = vcmask 0
      %139 = vst.msk [vmem:[#allocation8] sm:$0x1] %vm138, %v137
    $region33: #{tpu_custom_call.1} parent=1 // pred_fallthru
      _
    // Predicated region
    $region34: #{tpu_custom_call.1} parent=1 // pred_check
      _
    $region35: #{tpu_custom_call.1} parent=1 // pred_check_branch
      %141 = sbr.rel (0) target = $region37
    $region36: #{tpu_custom_call.1} parent=1 // pred_region
      %s143 = ssub.s32 16, 16
      %144 = vsyncadd [#allocation5], %s143
      %s146 = sshll.u32 [#allocation8], 4
      %s147 = int_to_ptr.vmem [resolvable:$true] %s146
      %149 = dma.vmem_to_hbm [thread:$0]  %s147, 16, %s2, [#allocation5]
    $region37: #{tpu_custom_call.1} parent=1 // pred_fallthru
      _
    // Predicated region
    $region38: #{tpu_custom_call.1} parent=1 // pred_check
      _
    $region39: #{tpu_custom_call.1} parent=1 // pred_check_branch
      %151 = sbr.rel (0) target = $region41
    $region40: #{tpu_custom_call.1} parent=1 // pred_region
      %152 = dma.done [#allocation5], 16
    $region41: #{tpu_custom_call.1} parent=1 // pred_fallthru
      _
    %153 = vsyncpa [#allocation4], 1
    %154 = vsyncpa [#allocation7], 1
    %155 = vsyncpa [#allocation5], 1

</llo_original>
